<compile_context>
chip_gen: v7x
topology: tpu7x:2x2x1
jax: 0.10.0
libtpu: 0.0.40
codegen_flags: <defaults>
</compile_context>

<pallas_src>
import jax
import jax.numpy as jnp
from jax.experimental import pallas as pl
from jax.experimental.pallas import tpu as pltpu


def _round_up(x, m):
    return ((x + m - 1) // m) * m


def attention_pool_kernel(hidden_ref, mask_ref, w_ref, b_ref, ctx_ref, out_ref,
                          m_sc, l_sc, acc_sc):
    # hidden_ref: [tb, sb, H] (native dtype)   mask_ref: [tb, sb] int32
    # w_ref: [H, A]   b_ref, ctx_ref: [1, A] f32   out_ref: [tb, H] f32
    # scratch: m_sc/l_sc [tb, 1] f32, acc_sc [tb, H] f32 (online softmax state)
    j = pl.program_id(1)

    @pl.when(j == 0)
    def _init():
        m_sc[...] = jnp.full(m_sc.shape, -jnp.inf, m_sc.dtype)
        l_sc[...] = jnp.zeros(l_sc.shape, l_sc.dtype)
        acc_sc[...] = jnp.zeros(acc_sc.shape, acc_sc.dtype)

    tb, sb, h_dim = hidden_ref.shape
    a_dim = w_ref.shape[1]

    hid = hidden_ref[...]                                    # keep native dtype

    # --- Projection: one (tb*sb, H) x (H, A) MXU matmul, f32 accumulate ------
    u = jnp.dot(hid.reshape(tb * sb, h_dim), w_ref[...],
                preferred_element_type=jnp.float32)
    # TODO(synk): for A < ~256 a bf16 tanh would relieve the EUP on v6e/v7x.
    u = jnp.tanh(u + b_ref[...])                             # [tb*sb, A] f32

    # --- Context score: VPU multiply + XLU lane reduce (no N=1 matmul) -------
    scores = jnp.sum(u.reshape(tb, sb, a_dim) * ctx_ref[...], axis=-1)  # [tb,sb]
    scores = jnp.where(mask_ref[...] > 0, scores, jnp.float32(-1e30))

    # --- Online (streaming) masked softmax + weighted pooling over S ---------
    m_prev = m_sc[...]
    m_new = jnp.maximum(m_prev, jnp.max(scores, axis=-1, keepdims=True))
    rescale = jnp.exp(m_prev - m_new)                        # [tb, 1]
    p = jnp.exp(scores - m_new)                              # [tb, sb]
    l_sc[...] = rescale * l_sc[...] + jnp.sum(p, axis=-1, keepdims=True)
    acc_sc[...] = rescale * acc_sc[...] + jnp.sum(p[:, :, None] * hid, axis=1)
    m_sc[...] = m_new

    @pl.when(j == pl.num_programs(1) - 1)
    def _finalize():
        out_ref[...] = (acc_sc[...] *
                        pl.reciprocal(l_sc[...], approx=True)).astype(out_ref.dtype)


def _vmem_limits():
    """Generation-aware scoped-VMEM limit and tile-chooser budget (bytes)."""
    try:
        cap = int(pltpu.get_tpu_info().vmem_capacity_bytes)
    except Exception:
        cap = 64 * 1024 * 1024            # conservative (v7x per-core VMEM)
    limit = (cap * 3) // 4                # scoped limit requested from Mosaic
    budget = (limit * 3) // 4             # what the tile chooser may consume
    return limit, budget


def _choose_tiles(B, S, H, A, hid_itemsize, w_itemsize, budget):
    """Pick (B_pad, tb, sb, S_pad) with sublane/lane-aligned, VMEM-fitting tiles."""
    sub = 8 if hid_itemsize >= 4 else (16 if hid_itemsize == 2 else 32)
    B_pad = _round_up(B, 8)

    # W/bias/ctx are single-buffered residents (pipeline_mode=pl.Buffered(1)).
    # TODO(synk): if W alone approaches the VMEM budget, K-tile the projection.
    const_bytes = H * A * w_itemsize + 8 * A * 4
    avail = max(budget - const_bytes, 1 << 20)

    def tile_bytes(tb, sb):
        hid_tile = 2 * tb * sb * H * hid_itemsize     # double-buffered hidden DMA
        mask_tile = 2 * tb * sb * 4                   # double-buffered int32 mask
        u_f32 = tb * sb * A * 4                       # projection intermediate
        prod_f32 = tb * sb * H * 4                    # alpha-weighted product
        out_tile = 2 * tb * H * 4
        scratch = tb * H * 4 + 2 * tb * 128 * 4
        return hid_tile + mask_tile + u_f32 + prod_f32 + out_tile + scratch

    def tb_candidates():
        cands = [t for t in range(B_pad, 0, -8) if B_pad % t == 0]
        if B_pad >= 16:
            # keep >=2 batch-grid steps so the "parallel" axis can shard across
            # the two TensorCores on v7x (harmless on 1-TC v5e/v6e).
            cands = [t for t in cands if t <= B_pad // 2] or [8]
        return cands

    # 1) prefer keeping the whole (padded) sequence resident per step
    s_full = _round_up(S, sub)
    for tb in tb_candidates():
        if tile_bytes(tb, s_full) <= avail:
            return B_pad, tb, s_full, s_full

    # 2) otherwise tile the sequence axis (online softmax); sb multiple of 128
    #    keeps the mask block lane-dense and the hidden block sublane-aligned.
    for sb in (2048, 1024, 512, 256, 128):
        if sb > _round_up(S, 128):
            continue
        s_pad = _round_up(S, sb)
        for tb in tb_candidates():
            if tile_bytes(tb, sb) <= avail:
                return B_pad, tb, sb, s_pad

    # 3) last resort: minimum aligned tile
    return B_pad, 8, 128, _round_up(S, 128)


def attention_pooler(hidden_output, attention_mask, w, b, ctx, *, tb=None, sb=None):
    """hidden_output: [B, S, H]; attention_mask: [B, S] (nonzero = attend).

    Returns pooled output [B, H] in float32.
    """
    B, S, H = hidden_output.shape
    A = w.shape[-1]
    assert w.shape == (H, A)

    # Lane-dense [1, A] f32 rows for bias and context vector.
    b_row = jnp.reshape(b, (1, A)).astype(jnp.float32)
    ctx_row = jnp.reshape(ctx, (1, A)).astype(jnp.float32)

    vmem_limit, vmem_budget = _vmem_limits()
    B_pad, tb_auto, sb_auto, S_pad = _choose_tiles(
        B, S, H, A, hidden_output.dtype.itemsize, w.dtype.itemsize, vmem_budget)

    if tb is None:
        tb = tb_auto
    else:
        assert tb % 8 == 0, "batch tile must be a multiple of 8 (sublane-aligned)"
        B_pad = _round_up(B, tb)
    if sb is None:
        sb = sb_auto
    else:
        if sb >= S:
            assert sb % 8 == 0
            S_pad = sb
        else:
            assert sb % 128 == 0, "sequence tile must be a multiple of 128"
            S_pad = _round_up(S, sb)

    # int32 mask (small stream); padded batch rows / sequence tail get mask=0.
    mask = (attention_mask != 0).astype(jnp.int32)
    hidden = hidden_output
    if B_pad != B or S_pad != S:
        hidden = jnp.pad(hidden, ((0, B_pad - B), (0, S_pad - S), (0, 0)))
        mask = jnp.pad(mask, ((0, B_pad - B), (0, S_pad - S)))

    grid = (B_pad // tb, S_pad // sb)

    flops = (2 * B_pad * S_pad * H * A          # projection matmul
             + 3 * B_pad * S_pad * A            # bias + ctx multiply/reduce
             + 6 * B_pad * S_pad                # softmax bookkeeping
             + 3 * B_pad * S_pad * H)           # weighted pooling
    transcendentals = B_pad * S_pad * A + B_pad * S_pad
    bytes_accessed = (
        hidden.size * hidden.dtype.itemsize
        + mask.size * mask.dtype.itemsize
        + w.size * w.dtype.itemsize
        + b_row.size * 4 + ctx_row.size * 4
        + B_pad * H * 4)

    const_spec2 = dict(pipeline_mode=pl.Buffered(1))  # never re-fetched / 1 buffer

    out = pl.pallas_call(
        attention_pool_kernel,
        out_shape=jax.ShapeDtypeStruct((B_pad, H), jnp.float32),
        grid=grid,
        in_specs=[
            pl.BlockSpec((tb, sb, H), lambda i, j: (i, j, 0)),            # hidden
            pl.BlockSpec((tb, sb), lambda i, j: (i, j)),                  # mask
            pl.BlockSpec((H, A), lambda i, j: (0, 0), **const_spec2),     # W
            pl.BlockSpec((1, A), lambda i, j: (0, 0), **const_spec2),     # bias
            pl.BlockSpec((1, A), lambda i, j: (0, 0), **const_spec2),     # ctx
        ],
        out_specs=pl.BlockSpec((tb, H), lambda i, j: (i, 0)),
        scratch_shapes=[
            pltpu.VMEM((tb, 1), jnp.float32),    # running max m
            pltpu.VMEM((tb, 1), jnp.float32),    # running denom l
            pltpu.VMEM((tb, H), jnp.float32),    # running weighted sum
        ],
        compiler_params=pltpu.CompilerParams(
            dimension_semantics=("parallel", "arbitrary"),
            vmem_limit_bytes=int(vmem_limit),
        ),
        cost_estimate=pl.CostEstimate(
            flops=int(flops),
            transcendentals=int(transcendentals),
            bytes_accessed=int(bytes_accessed),
        ),
    )(hidden, mask, w, b_row, ctx_row)

    return out[:B]


def reference_attention_pooler(hidden_output, attention_mask, w, b, ctx):
    """Pure-JAX reference for correctness checking (f32 math)."""
    h = hidden_output.astype(jnp.float32)
    u = jnp.tanh(jnp.einsum("bsh,ha->bsa", h, w.astype(jnp.float32))
                 + jnp.reshape(b, (1, 1, -1)).astype(jnp.float32))
    scores = jnp.einsum("bsa,a->bs", u, jnp.reshape(ctx, (-1,)).astype(jnp.float32))
    scores = jnp.where(attention_mask != 0, scores, -1e30)
    alpha = jax.nn.softmax(scores, axis=-1)
    return jnp.einsum("bs,bsh->bh", alpha, h)


if __name__ == "__main__":
    key = jax.random.PRNGKey(0)
    k_h, k_w, k_b, k_c, k_h2, k_w2, k_b2, k_c2 = jax.random.split(key, 8)

    # --- Small shapes: B=2, S=16, H=A=32 (attention_hidden_size == hidden_size)
    B, S, H = 2, 16, 32
    A = H
    hidden = jax.random.normal(k_h, (B, S, H), dtype=jnp.float32)
    # batch 0 fully attended, batch 1 has the last 3 positions masked.
    attention_mask = jnp.array([[1] * S, [1] * (S - 3) + [0] * 3], dtype=jnp.float32)
    w = jax.random.normal(k_w, (H, A), dtype=jnp.float32) * 0.1
    b = jax.random.normal(k_b, (1, A), dtype=jnp.float32) * 0.1
    ctx = jax.random.normal(k_c, (A, 1), dtype=jnp.float32) * 0.1

    ref = reference_attention_pooler(hidden, attention_mask, w, b, ctx)
    out = jax.block_until_ready(attention_pooler(hidden, attention_mask, w, b, ctx))
    assert out.shape == (B, H)
    assert jnp.allclose(out, ref, atol=5e-3, rtol=5e-3), "f32 mismatch vs reference"

    # bf16 activation/weight path: native-dtype MXU matmul, f32 accumulation.
    hidden_bf = hidden.astype(jnp.bfloat16)
    w_bf = w.astype(jnp.bfloat16)
    out_bf = jax.block_until_ready(
        attention_pooler(hidden_bf, attention_mask, w_bf, b, ctx))
    ref_bf = reference_attention_pooler(hidden_bf, attention_mask, w_bf, b, ctx)
    assert jnp.allclose(out_bf, ref_bf, atol=5e-2, rtol=5e-2), "bf16 mismatch"

    # --- Exercise batch padding (B=4 -> 8) and S-axis online-softmax tiling ---
    B2, S2, H2 = 4, 256, 64
    A2 = H2
    hidden2 = jax.random.normal(k_h2, (B2, S2, H2), dtype=jnp.float32)
    lengths = jnp.array([S2, 200, 97, 1])
    mask2 = (jnp.arange(S2)[None, :] < lengths[:, None]).astype(jnp.float32)
    w2 = jax.random.normal(k_w2, (H2, A2), dtype=jnp.float32) * 0.1
    b2 = jax.random.normal(k_b2, (1, A2), dtype=jnp.float32) * 0.1
    ctx2 = jax.random.normal(k_c2, (A2, 1), dtype=jnp.float32) * 0.1

    ref2 = reference_attention_pooler(hidden2, mask2, w2, b2, ctx2)
    out2 = jax.block_until_ready(
        attention_pooler(hidden2, mask2, w2, b2, ctx2, sb=128))  # 2 sequence steps
    assert out2.shape == (B2, H2)
    assert jnp.allclose(out2, ref2, atol=5e-3, rtol=5e-3), "online-softmax mismatch"

    print("KERNEL_OK")
</pallas_src>

<mosaic_0001>
module attributes {stable_mosaic.version = 11 : i64} {
  func.func @attention_pool_kernel(%arg0: i32, %arg1: i32, %arg2: memref<8x16x32xf32, #tpu.memory_space<vmem>>, %arg3: memref<8x16xi32, #tpu.memory_space<vmem>>, %arg4: memref<32x32xf32, #tpu.memory_space<vmem>>, %arg5: memref<1x32xf32, #tpu.memory_space<vmem>>, %arg6: memref<1x32xf32, #tpu.memory_space<vmem>>, %arg7: memref<8x32xf32, #tpu.memory_space<vmem>>, %arg8: memref<8x1xf32, #tpu.memory_space<vmem>>, %arg9: memref<8x1xf32, #tpu.memory_space<vmem>>, %arg10: memref<8x32xf32, #tpu.memory_space<vmem>>) attributes {dimension_semantics = [#tpu.dimension_semantics<parallel>, #tpu.dimension_semantics<arbitrary>], iteration_bounds = array<i64: 1, 1>, scalar_prefetch = 0 : i64, scratch_operands = 3 : i64, tpu.core_type = #tpu.core_type<tc>, window_params = [{transform_indices = @transform_0, window_bounds = array<i64: 8, 16, 32>}, {transform_indices = @transform_1, window_bounds = array<i64: 8, 16>}, {pipeline_mode = #tpu.pipeline_mode<synchronous>, transform_indices = @transform_2, window_bounds = array<i64: 32, 32>}, {pipeline_mode = #tpu.pipeline_mode<synchronous>, transform_indices = @transform_3, window_bounds = array<i64: 1, 32>}, {pipeline_mode = #tpu.pipeline_mode<synchronous>, transform_indices = @transform_4, window_bounds = array<i64: 1, 32>}, {transform_indices = @transform_5, window_bounds = array<i64: 8, 32>}]} {
    %c0_i32 = arith.constant 0 : i32
    %0 = arith.cmpi eq, %arg1, %c0_i32 : i32
    %1 = arith.extui %0 : i1 to i32
    %c0_i32_0 = arith.constant 0 : i32
    %2 = arith.cmpi ne, %1, %c0_i32_0 : i32
    scf.if %2 {
      %cst_31 = arith.constant 0xFF800000 : f32
      %50 = vector.broadcast %cst_31 : f32 to vector<8x1xf32>
      %c0_32 = arith.constant 0 : index
      %c0_33 = arith.constant 0 : index
      %51 = vector.load %arg8[%c0_32, %c0_33] : memref<8x1xf32, #tpu.memory_space<vmem>>, vector<8x1xf32>
      tpu.vector_store %arg8[%c0_32, %c0_33], %50 {strides = array<i32>} : memref<8x1xf32, #tpu.memory_space<vmem>>, vector<8x1xf32>,
      %cst_34 = arith.constant 0.000000e+00 : f32
      %52 = vector.broadcast %cst_34 : f32 to vector<8x1xf32>
      %c0_35 = arith.constant 0 : index
      %c0_36 = arith.constant 0 : index
      %53 = vector.load %arg9[%c0_35, %c0_36] : memref<8x1xf32, #tpu.memory_space<vmem>>, vector<8x1xf32>
      tpu.vector_store %arg9[%c0_35, %c0_36], %52 {strides = array<i32>} : memref<8x1xf32, #tpu.memory_space<vmem>>, vector<8x1xf32>,
      %cst_37 = arith.constant 0.000000e+00 : f32
      %54 = vector.broadcast %cst_37 : f32 to vector<8x32xf32>
      %c0_38 = arith.constant 0 : index
      %c0_39 = arith.constant 0 : index
      %55 = vector.load %arg10[%c0_38, %c0_39] : memref<8x32xf32, #tpu.memory_space<vmem>>, vector<8x32xf32>
      tpu.vector_store %arg10[%c0_38, %c0_39], %54 {strides = array<i32>} : memref<8x32xf32, #tpu.memory_space<vmem>>, vector<8x32xf32>,
    } else {
    }
    %c0 = arith.constant 0 : index
    %c0_1 = arith.constant 0 : index
    %c0_2 = arith.constant 0 : index
    %3 = vector.load %arg2[%c0, %c0_1, %c0_2] : memref<8x16x32xf32, #tpu.memory_space<vmem>>, vector<8x16x32xf32>
    %4 = vector.shape_cast %3 : vector<8x16x32xf32> to vector<128x32xf32>
    %c0_3 = arith.constant 0 : index
    %c0_4 = arith.constant 0 : index
    %5 = vector.load %arg4[%c0_3, %c0_4] : memref<32x32xf32, #tpu.memory_space<vmem>>, vector<32x32xf32>
    %cst = arith.constant dense<0.000000e+00> : vector<128x32xf32>
    %6 = tpu.matmul %4, %5, %cst {dimension_numbers = #tpu.dot_dimension_numbers<[1], [0], [0], [1], [0, 0, 1, 1], [], []>} : vector<128x32xf32>, vector<32x32xf32>, vector<128x32xf32> -> vector<128x32xf32>
    %c0_5 = arith.constant 0 : index
    %c0_6 = arith.constant 0 : index
    %7 = vector.load %arg5[%c0_5, %c0_6] : memref<1x32xf32, #tpu.memory_space<vmem>>, vector<1x32xf32>
    %8 = vector.broadcast %7 : vector<1x32xf32> to vector<128x32xf32>
    %9 = arith.addf %6, %8 : vector<128x32xf32>
    %10 = math.tanh %9 : vector<128x32xf32>
    %11 = vector.shape_cast %10 : vector<128x32xf32> to vector<8x16x32xf32>
    %c0_7 = arith.constant 0 : index
    %c0_8 = arith.constant 0 : index
    %12 = vector.load %arg6[%c0_7, %c0_8] : memref<1x32xf32, #tpu.memory_space<vmem>>, vector<1x32xf32>
    %13 = vector.shape_cast %12 : vector<1x32xf32> to vector<1x1x32xf32>
    %14 = vector.broadcast %13 : vector<1x1x32xf32> to vector<8x16x32xf32>
    %15 = arith.mulf %11, %14 : vector<8x16x32xf32>
    %cst_9 = arith.constant dense<0.000000e+00> : vector<8x16xf32>
    %16 = vector.multi_reduction <add>, %15, %cst_9 [2] : vector<8x16x32xf32> to vector<8x16xf32>
    %c0_10 = arith.constant 0 : index
    %c0_11 = arith.constant 0 : index
    %17 = vector.load %arg3[%c0_10, %c0_11] : memref<8x16xi32, #tpu.memory_space<vmem>>, vector<8x16xi32>
    %c0_i32_12 = arith.constant 0 : i32
    %18 = vector.broadcast %c0_i32_12 : i32 to vector<8x16xi32>
    %19 = arith.cmpi sgt, %17, %18 : vector<8x16xi32>
    %cst_13 = arith.constant -1.000000e+30 : f32
    %20 = vector.broadcast %cst_13 : f32 to vector<8x16xf32>
    %21 = arith.select %19, %16, %20 : vector<8x16xi1>, vector<8x16xf32>
    %c0_14 = arith.constant 0 : index
    %c0_15 = arith.constant 0 : index
    %22 = vector.load %arg8[%c0_14, %c0_15] : memref<8x1xf32, #tpu.memory_space<vmem>>, vector<8x1xf32>
    %cst_16 = arith.constant dense<0xFF800000> : vector<8xf32>
    %23 = vector.multi_reduction <maximumf>, %21, %cst_16 [1] : vector<8x16xf32> to vector<8xf32>
    %24 = vector.shape_cast %23 : vector<8xf32> to vector<8x1xf32>
    %25 = arith.maximumf %22, %24 : vector<8x1xf32>
    %26 = arith.subf %22, %25 : vector<8x1xf32>
    %27 = math.exp %26 : vector<8x1xf32>
    %28 = vector.broadcast %25 : vector<8x1xf32> to vector<8x16xf32>
    %29 = arith.subf %21, %28 : vector<8x16xf32>
    %30 = math.exp %29 : vector<8x16xf32>
    %c0_17 = arith.constant 0 : index
    %c0_18 = arith.constant 0 : index
    %31 = vector.load %arg9[%c0_17, %c0_18] : memref<8x1xf32, #tpu.memory_space<vmem>>, vector<8x1xf32>
    %32 = arith.mulf %27, %31 : vector<8x1xf32>
    %cst_19 = arith.constant dense<0.000000e+00> : vector<8xf32>
    %33 = vector.multi_reduction <add>, %30, %cst_19 [1] : vector<8x16xf32> to vector<8xf32>
    %34 = vector.shape_cast %33 : vector<8xf32> to vector<8x1xf32>
    %35 = arith.addf %32, %34 : vector<8x1xf32>
    %c0_20 = arith.constant 0 : index
    %c0_21 = arith.constant 0 : index
    %36 = vector.load %arg9[%c0_20, %c0_21] : memref<8x1xf32, #tpu.memory_space<vmem>>, vector<8x1xf32>
    tpu.vector_store %arg9[%c0_20, %c0_21], %35 {strides = array<i32>} : memref<8x1xf32, #tpu.memory_space<vmem>>, vector<8x1xf32>,
    %c0_22 = arith.constant 0 : index
    %c0_23 = arith.constant 0 : index
    %37 = vector.load %arg10[%c0_22, %c0_23] : memref<8x32xf32, #tpu.memory_space<vmem>>, vector<8x32xf32>
    %38 = vector.broadcast %27 : vector<8x1xf32> to vector<8x32xf32>
    %39 = arith.mulf %38, %37 : vector<8x32xf32>
    %40 = vector.shape_cast %30 : vector<8x16xf32> to vector<8x16x1xf32>
    %41 = vector.broadcast %40 : vector<8x16x1xf32> to vector<8x16x32xf32>
    %42 = arith.mulf %41, %3 : vector<8x16x32xf32>
    %cst_24 = arith.constant dense<0.000000e+00> : vector<8x32xf32>
    %43 = vector.multi_reduction <add>, %42, %cst_24 [1] : vector<8x16x32xf32> to vector<8x32xf32>
    %44 = arith.addf %39, %43 : vector<8x32xf32>
    %c0_25 = arith.constant 0 : index
    %c0_26 = arith.constant 0 : index
    %45 = vector.load %arg10[%c0_25, %c0_26] : memref<8x32xf32, #tpu.memory_space<vmem>>, vector<8x32xf32>
    tpu.vector_store %arg10[%c0_25, %c0_26], %44 {strides = array<i32>} : memref<8x32xf32, #tpu.memory_space<vmem>>, vector<8x32xf32>,
    %c0_27 = arith.constant 0 : index
    %c0_28 = arith.constant 0 : index
    %46 = vector.load %arg8[%c0_27, %c0_28] : memref<8x1xf32, #tpu.memory_space<vmem>>, vector<8x1xf32>
    tpu.vector_store %arg8[%c0_27, %c0_28], %25 {strides = array<i32>} : memref<8x1xf32, #tpu.memory_space<vmem>>, vector<8x1xf32>,
    %c0_i32_29 = arith.constant 0 : i32
    %47 = arith.cmpi eq, %arg1, %c0_i32_29 : i32
    %48 = arith.extui %47 : i1 to i32
    %c0_i32_30 = arith.constant 0 : i32
    %49 = arith.cmpi ne, %48, %c0_i32_30 : i32
    scf.if %49 {
      %c0_31 = arith.constant 0 : index
      %c0_32 = arith.constant 0 : index
      %50 = vector.load %arg10[%c0_31, %c0_32] : memref<8x32xf32, #tpu.memory_space<vmem>>, vector<8x32xf32>
      %c0_33 = arith.constant 0 : index
      %c0_34 = arith.constant 0 : index
      %51 = vector.load %arg9[%c0_33, %c0_34] : memref<8x1xf32, #tpu.memory_space<vmem>>, vector<8x1xf32>
      %52 = tpu.reciprocal %51 {approx = true} : vector<8x1xf32> -> vector<8x1xf32>
      %53 = vector.broadcast %52 : vector<8x1xf32> to vector<8x32xf32>
      %54 = arith.mulf %50, %53 : vector<8x32xf32>
      %c0_35 = arith.constant 0 : index
      %c0_36 = arith.constant 0 : index
      %55 = vector.load %arg7[%c0_35, %c0_36] : memref<8x32xf32, #tpu.memory_space<vmem>>, vector<8x32xf32>
      tpu.vector_store %arg7[%c0_35, %c0_36], %54 {strides = array<i32>} : memref<8x32xf32, #tpu.memory_space<vmem>>, vector<8x32xf32>,
    } else {
    }
    return
  }
  func.func @transform_0(%arg0: i32, %arg1: i32) -> (i32, i32, i32) {
    %c0_i32 = arith.constant 0 : i32
    %c0_i32_0 = arith.constant 0 : i32
    return %arg0, %arg1, %c0_i32 : i32, i32, i32
  }
  func.func @transform_1(%arg0: i32, %arg1: i32) -> (i32, i32) {
    %c0_i32 = arith.constant 0 : i32
    return %arg0, %arg1 : i32, i32
  }
  func.func @transform_2(%arg0: i32, %arg1: i32) -> (i32, i32) {
    %c0_i32 = arith.constant 0 : i32
    %c0_i32_0 = arith.constant 0 : i32
    %c0_i32_1 = arith.constant 0 : i32
    return %c0_i32, %c0_i32_0 : i32, i32
  }
  func.func @transform_3(%arg0: i32, %arg1: i32) -> (i32, i32) {
    %c0_i32 = arith.constant 0 : i32
    %c0_i32_0 = arith.constant 0 : i32
    %c0_i32_1 = arith.constant 0 : i32
    return %c0_i32, %c0_i32_0 : i32, i32
  }
  func.func @transform_4(%arg0: i32, %arg1: i32) -> (i32, i32) {
    %c0_i32 = arith.constant 0 : i32
    %c0_i32_0 = arith.constant 0 : i32
    %c0_i32_1 = arith.constant 0 : i32
    return %c0_i32, %c0_i32_0 : i32, i32
  }
  func.func @transform_5(%arg0: i32, %arg1: i32) -> (i32, i32) {
    %c0_i32 = arith.constant 0 : i32
    %c0_i32_0 = arith.constant 0 : i32
    return %arg0, %c0_i32 : i32, i32
  }
}

</mosaic_0001>

<llo_original>
// kernel: tpu_custom_call.1
$region0: #{tpu_custom_call.1}
  #allocation0 [shape = 'u32[]', space=smem, size = 0x4, offset = 0x4, fixed_abs, tag = 'smem constant byte address 0x4 - core index']
  #allocation1 [shape = 'u32[144,128]{1,0:T(1,128)}', space=vmem, size = 0x12000, scoped, tag = 'internal scratch']
  #allocation2 [shape = 'f32[8,1]{1,0:T(8,128)}', space=vmem, size = 0x1000, scoped, tag = 'scratch operand']
  #allocation3 [shape = 'f32[8,1]{1,0:T(8,128)}', space=vmem, size = 0x1000, scoped, tag = 'scratch operand']
  #allocation4 [shape = 'f32[8,32]{1,0:T(8,128)}', space=vmem, size = 0x1000, scoped, tag = 'scratch operand']
  %s0 = inlined_call_operand.hbm [shape: f32[8,16,32], index: 0, kind: input, shape index: {}]
  %s1 = inlined_call_operand.hbm [shape: s32[8,16], index: 1, kind: input, shape index: {}]
  %s2 = inlined_call_operand.hbm [shape: f32[32,32], index: 2, kind: input, shape index: {}]
  %s3 = inlined_call_operand.vmem [shape: f32[1,32], index: 3, kind: input, shape index: {}]
  %s4 = inlined_call_operand.vmem [shape: f32[1,32], index: 4, kind: input, shape index: {}]
  %s5 = inlined_call_operand.hbm [shape: f32[8,32], index: 5, kind: output, shape index: {}]
  %s6 = sld [smem:[#allocation0]]
  $region50: #{tpu_custom_call.1} parent=0
    _
  %s8 = ssub.s32 1, %s6
  %s9 = scalar_select 0, %s8, %s6
  $region1: #{tpu_custom_call.1} parent=0
    #allocation5 [shape = 'u8[65536]{0}', space=vmem, size = 0x10000, scoped, tag = 'input window, operand 0, single buffered']
    #allocation6 [shape = 's32[1]{0}', space=sflag, size = 0x4, scoped, tag = 'scoped memory for tpu_custom_call.1']
    #allocation7 [shape = 's32[1]{0}', space=sflag, size = 0x4, scoped, tag = 'scoped memory for tpu_custom_call.1']
    #allocation8 [shape = 'u8[4096]{0}', space=vmem, size = 0x1000, scoped, tag = 'input window, operand 1, single buffered']
    #allocation9 [shape = 's32[1]{0}', space=sflag, size = 0x4, scoped, tag = 'scoped memory for tpu_custom_call.1']
    #allocation10 [shape = 'u8[16384]{0}', space=vmem, size = 0x4000, scoped, tag = 'input window, operand 2, single buffered']
    #allocation11 [shape = 'u8[4096]{0}', space=vmem, size = 0x1000, scoped, tag = 'output window, operand 0, single buffered']
    %10 = vsyncpa [#allocation6], 0
    %11 = vsyncpa [#allocation9], 0
    %12 = vsyncpa [#allocation7], 0
    // Predicated region
    $region2: #{tpu_custom_call.1} parent=1 // pred_check
      _
    $region3: #{tpu_custom_call.1} parent=1 // pred_check_branch
      %14 = sbr.rel (0) target = $region5
    $region4: #{tpu_custom_call.1} parent=1 // pred_region
      %s16 = ssub.s32 2048, 2048
      %17 = vsyncadd [#allocation6], %s16
      %s18 = sshll.u32 [#allocation5], 4
      %s19 = int_to_ptr.vmem [resolvable:$true] %s18
      %24 = dma.hbm_to_vmem [thread:$0]  %s0, 2048, %s19, [#allocation6], 128, 128, 8
    $region5: #{tpu_custom_call.1} parent=1 // pred_fallthru
      _
    // Predicated region
    $region6: #{tpu_custom_call.1} parent=1 // pred_check
      _
    $region7: #{tpu_custom_call.1} parent=1 // pred_check_branch
      %26 = sbr.rel (0) target = $region9
    $region8: #{tpu_custom_call.1} parent=1 // pred_region
      %s28 = ssub.s32 128, 128
      %29 = vsyncadd [#allocation9], %s28
      %s31 = sshll.u32 [#allocation8], 4
      %s32 = int_to_ptr.vmem [resolvable:$true] %s31
      %34 = dma.hbm_to_vmem [thread:$0]  %s1, 128, %s32, [#allocation9]
    $region9: #{tpu_custom_call.1} parent=1 // pred_fallthru
      _
    // Predicated region
    $region10: #{tpu_custom_call.1} parent=1 // pred_check
      _
    $region11: #{tpu_custom_call.1} parent=1 // pred_check_branch
      %36 = sbr.rel (0) target = $region13
    $region12: #{tpu_custom_call.1} parent=1 // pred_region
      %s38 = ssub.s32 512, 512
      %39 = vsyncadd [#allocation9], %s38
      %s40 = sshll.u32 [#allocation10], 4
      %s41 = int_to_ptr.vmem [resolvable:$true] %s40
      %46 = dma.hbm_to_vmem [thread:$0]  %s2, 512, %s41, [#allocation9], 128, 128, 8
    $region13: #{tpu_custom_call.1} parent=1 // pred_fallthru
      _
    // Predicated region
    $region14: #{tpu_custom_call.1} parent=1 // pred_check
      _
    $region15: #{tpu_custom_call.1} parent=1 // pred_check_branch
      %48 = sbr.rel (0) target = $region17
    $region16: #{tpu_custom_call.1} parent=1 // pred_region
      _
    $region17: #{tpu_custom_call.1} parent=1 // pred_fallthru
      _
    // Predicated region
    $region18: #{tpu_custom_call.1} parent=1 // pred_check
      _
    $region19: #{tpu_custom_call.1} parent=1 // pred_check_branch
      %50 = sbr.rel (0) target = $region21
    $region20: #{tpu_custom_call.1} parent=1 // pred_region
      _
    $region21: #{tpu_custom_call.1} parent=1 // pred_fallthru
      _
    // Predicated region
    $region22: #{tpu_custom_call.1} parent=1 // pred_check
      _
    $region23: #{tpu_custom_call.1} parent=1 // pred_check_branch
      %52 = sbr.rel (0) target = $region25
    $region24: #{tpu_custom_call.1} parent=1 // pred_region
      %53 = dma.done [#allocation6], 2048
    $region25: #{tpu_custom_call.1} parent=1 // pred_fallthru
      _
    // Predicated region
    $region26: #{tpu_custom_call.1} parent=1 // pred_check
      _
    $region27: #{tpu_custom_call.1} parent=1 // pred_check_branch
      %55 = sbr.rel (0) target = $region29
    $region28: #{tpu_custom_call.1} parent=1 // pred_region
      %56 = dma.done [#allocation9], 128
    $region29: #{tpu_custom_call.1} parent=1 // pred_fallthru
      _
    // Predicated region
    $region30: #{tpu_custom_call.1} parent=1 // pred_check
      _
    $region31: #{tpu_custom_call.1} parent=1 // pred_check_branch
      %58 = sbr.rel (0) target = $region33
    $region32: #{tpu_custom_call.1} parent=1 // pred_region
      %59 = dma.done [#allocation9], 512
    $region33: #{tpu_custom_call.1} parent=1 // pred_fallthru
      _
    %p60 = scmp.eq.s32.totalorder 0, 0
    // Predicated region
    $region34: #{tpu_custom_call.1} parent=1 // pred_check
      %p61 = pneg %p60
    $region35: #{tpu_custom_call.1} parent=1 // pred_check_branch
      %63 = sbr.rel (%p61) target = $region37
    $region36: #{tpu_custom_call.1} parent=1 // pred_region
      %vm64 = vcmask 7168
      %65 = vst.msk [vmem:[#allocation2] sm:$0xff] %vm64, -inf
      %66 = vst.msk [vmem:[#allocation3] sm:$0xff] %vm64, 0.0
      %vm67 = vcmask 261120
      %68 = vst.msk [vmem:[#allocation4] sm:$0xff] %vm67, 0.0
    $region37: #{tpu_custom_call.1} parent=1 // pred_fallthru
      _
    %v69 = vld [vmem:[#allocation5] sm:$0xff]
    %v70 = vld [vmem:[#allocation5 + $0x8] sm:$0xff]
    %v71 = vld [vmem:[#allocation5 + $0x10] sm:$0xff]
    %v72 = vld [vmem:[#allocation5 + $0x18] sm:$0xff]
    %v73 = vld [vmem:[#allocation5 + $0x20] sm:$0xff]
    %v74 = vld [vmem:[#allocation5 + $0x28] sm:$0xff]
    %v75 = vld [vmem:[#allocation5 + $0x30] sm:$0xff]
    %v76 = vld [vmem:[#allocation5 + $0x38] sm:$0xff]
    %v77 = vld [vmem:[#allocation5 + $0x40] sm:$0xff]
    %v78 = vld [vmem:[#allocation5 + $0x48] sm:$0xff]
    %v79 = vld [vmem:[#allocation5 + $0x50] sm:$0xff]
    %v80 = vld [vmem:[#allocation5 + $0x58] sm:$0xff]
    %v81 = vld [vmem:[#allocation5 + $0x60] sm:$0xff]
    %v82 = vld [vmem:[#allocation5 + $0x68] sm:$0xff]
    %v83 = vld [vmem:[#allocation5 + $0x70] sm:$0xff]
    %v84 = vld [vmem:[#allocation5 + $0x78] sm:$0xff]
    %v85 = vld [vmem:[#allocation10] sm:$0xff]
    %v86 = vld [vmem:[#allocation10 + $0x8] sm:$0xff]
    %v87 = vld [vmem:[#allocation10 + $0x10] sm:$0xff]
    %v88 = vld [vmem:[#allocation10 + $0x18] sm:$0xff]
    %v89 = vld [vmem:[%s3] sm:$0x1]
    %v91 = vlaneseq
    %v92 = vshrl.u32 %v91, 7
    %v93 = vsub.s32 0, %v92
    %v94 = vrot.slane %v89, %v93
    %vm96 = vcmask 261120
    %v98 = vsel %vm96, %v69, 0
    %v101 = vsel %vm96, %v70, 0
    %v104 = vsel %vm96, %v71, 0
    %v107 = vsel %vm96, %v72, 0
    %v110 = vsel %vm96, %v73, 0
    %v113 = vsel %vm96, %v74, 0
    %v116 = vsel %vm96, %v75, 0
    %v119 = vsel %vm96, %v76, 0
    %v122 = vsel %vm96, %v77, 0
    %v125 = vsel %vm96, %v78, 0
    %v128 = vsel %vm96, %v79, 0
    %v131 = vsel %vm96, %v80, 0
    %v134 = vsel %vm96, %v81, 0
    %v137 = vsel %vm96, %v82, 0
    %v140 = vsel %vm96, %v83, 0
    %v143 = vsel %vm96, %v84, 0
    %145 = vmatprep.subr.mxu0 0.0
    %146 = vmatpush1.msra.mxu0 %v85
    %147 = vmatprep.subr.mxu0 0.0
    %148 = vmatpush1.msra.mxu0 %v86
    %149 = vmatprep.subr.mxu0 0.0
    %150 = vmatpush1.msra.mxu0 %v87
    %151 = vmatprep.subr.mxu0 0.0
    %152 = vmatpush1.msra.mxu0 %v88
    %153 = vmatprep.subr.mxu0 0.0
    %154 = vmatpush1.msra.mxu0 0.0
    %155 = vmatprep.subr.mxu0 0.0
    %156 = vmatpush1.msra.mxu0 0.0
    %157 = vmatprep.subr.mxu0 0.0
    %158 = vmatpush1.msra.mxu0 0.0
    %159 = vmatprep.subr.mxu0 0.0
    %160 = vmatpush1.msra.mxu0 0.0
    %161 = vmatprep.subr.mxu0 0.0
    %162 = vmatpush1.msra.mxu0 0.0
    %163 = vmatprep.subr.mxu0 0.0
    %164 = vmatpush1.msra.mxu0 0.0
    %165 = vmatprep.subr.mxu0 0.0
    %166 = vmatpush1.msra.mxu0 0.0
    %167 = vmatprep.subr.mxu0 0.0
    %168 = vmatpush1.msra.mxu0 0.0
    %169 = vmatprep.subr.mxu0 0.0
    %170 = vmatpush1.msra.mxu0 0.0
    %171 = vmatprep.subr.mxu0 0.0
    %172 = vmatpush1.msra.mxu0 0.0
    %173 = vmatprep.subr.mxu0 0.0
    %174 = vmatpush1.msra.mxu0 0.0
    %175 = vmatprep.subr.mxu0 0.0
    %176 = vmatpush1.msra.mxu0 0.0
    %177 = vmatprep.subr.mxu0 0.0
    %178 = vmatpush1.msra.mxu0 0.0
    %179 = vmatprep.subr.mxu0 0.0
    %180 = vmatpush1.msra.mxu0 0.0
    %181 = vmatprep.subr.mxu0 0.0
    %182 = vmatpush1.msra.mxu0 0.0
    %183 = vmatprep.subr.mxu0 0.0
    %184 = vmatpush1.msra.mxu0 0.0
    %185 = vmatprep.subr.mxu0 0.0
    %186 = vmatpush1.msra.mxu0 0.0
    %187 = vmatprep.subr.mxu0 0.0
    %188 = vmatpush1.msra.mxu0 0.0
    %189 = vmatprep.subr.mxu0 0.0
    %190 = vmatpush1.msra.mxu0 0.0
    %191 = vmatprep.subr.mxu0 0.0
    %192 = vmatpush1.msra.mxu0 0.0
    %193 = vmatprep.subr.mxu0 0.0
    %194 = vmatpush1.msra.mxu0 0.0
    %195 = vmatprep.subr.mxu0 0.0
    %196 = vmatpush1.msra.mxu0 0.0
    %197 = vmatprep.subr.mxu0 0.0
    %198 = vmatpush1.msra.mxu0 0.0
    %199 = vmatprep.subr.mxu0 0.0
    %200 = vmatpush1.msra.mxu0 0.0
    %201 = vmatprep.subr.mxu0 0.0
    %202 = vmatpush1.msra.mxu0 0.0
    %203 = vmatprep.subr.mxu0 0.0
    %204 = vmatpush1.msra.mxu0 0.0
    %205 = vmatprep.subr.mxu0 0.0
    %206 = vmatpush1.msra.mxu0 0.0
    %207 = vmatprep.subr.mxu0 0.0
    %208 = vmatpush1.msra.mxu0 0.0
    %209 = vmatprep.mubr.f32.mxu0 0.0
    %210 = vmatmul.mubr.f32.gmra.mrb[0].mxu0 %v98
    %v211 = vpop.f32.mrb[0].mxu0
    %v212 = vadd.f32 %v94, %v211
    %v213 = vpop.f32.mrb[0].mxu0
    %214 = vmatprep.mubr.f32.mxu0 0.0
    %215 = vmatmul.mubr.f32.gmra.mrb[0].mxu0 %v101
    %v216 = vpop.f32.mrb[0].mxu0
    %v217 = vadd.f32 %v94, %v216
    %v218 = vpop.f32.mrb[0].mxu0
    %219 = vmatprep.mubr.f32.mxu0 0.0
    %220 = vmatmul.mubr.f32.gmra.mrb[0].mxu0 %v104
    %v221 = vpop.f32.mrb[0].mxu0
    %v222 = vadd.f32 %v94, %v221
    %v223 = vpop.f32.mrb[0].mxu0
    %224 = vmatprep.mubr.f32.mxu0 0.0
    %225 = vmatmul.mubr.f32.gmra.mrb[0].mxu0 %v107
    %v226 = vpop.f32.mrb[0].mxu0
    %v227 = vadd.f32 %v94, %v226
    %v228 = vpop.f32.mrb[0].mxu0
    %229 = vmatprep.mubr.f32.mxu0 0.0
    %230 = vmatmul.mubr.f32.gmra.mrb[0].mxu0 %v110
    %v231 = vpop.f32.mrb[0].mxu0
    %v232 = vadd.f32 %v94, %v231
    %v233 = vpop.f32.mrb[0].mxu0
    %234 = vmatprep.mubr.f32.mxu0 0.0
    %235 = vmatmul.mubr.f32.gmra.mrb[0].mxu0 %v113
    %v236 = vpop.f32.mrb[0].mxu0
    %v237 = vadd.f32 %v94, %v236
    %v238 = vpop.f32.mrb[0].mxu0
    %239 = vmatprep.mubr.f32.mxu0 0.0
    %240 = vmatmul.mubr.f32.gmra.mrb[0].mxu0 %v116
    %v241 = vpop.f32.mrb[0].mxu0
    %v242 = vadd.f32 %v94, %v241
    %v243 = vpop.f32.mrb[0].mxu0
    %244 = vmatprep.mubr.f32.mxu0 0.0
    %245 = vmatmul.mubr.f32.gmra.mrb[0].mxu0 %v119
    %v246 = vpop.f32.mrb[0].mxu0
    %v247 = vadd.f32 %v94, %v246
    %v248 = vpop.f32.mrb[0].mxu0
    %249 = vmatprep.mubr.f32.mxu0 0.0
    %250 = vmatmul.mubr.f32.gmra.mrb[0].mxu0 %v122
    %v251 = vpop.f32.mrb[0].mxu0
    %v252 = vadd.f32 %v94, %v251
    %v253 = vpop.f32.mrb[0].mxu0
    %254 = vmatprep.mubr.f32.mxu0 0.0
    %255 = vmatmul.mubr.f32.gmra.mrb[0].mxu0 %v125
    %v256 = vpop.f32.mrb[0].mxu0
    %v257 = vadd.f32 %v94, %v256
    %v258 = vpop.f32.mrb[0].mxu0
    %259 = vmatprep.mubr.f32.mxu0 0.0
    %260 = vmatmul.mubr.f32.gmra.mrb[0].mxu0 %v128
    %v261 = vpop.f32.mrb[0].mxu0
    %v262 = vadd.f32 %v94, %v261
    %v263 = vpop.f32.mrb[0].mxu0
    %264 = vmatprep.mubr.f32.mxu0 0.0
    %265 = vmatmul.mubr.f32.gmra.mrb[0].mxu0 %v131
    %v266 = vpop.f32.mrb[0].mxu0
    %v267 = vadd.f32 %v94, %v266
    %v268 = vpop.f32.mrb[0].mxu0
    %269 = vmatprep.mubr.f32.mxu0 0.0
    %270 = vmatmul.mubr.f32.gmra.mrb[0].mxu0 %v134
    %v271 = vpop.f32.mrb[0].mxu0
    %v272 = vadd.f32 %v94, %v271
    %v273 = vpop.f32.mrb[0].mxu0
    %274 = vmatprep.mubr.f32.mxu0 0.0
    %275 = vmatmul.mubr.f32.gmra.mrb[0].mxu0 %v137
    %v276 = vpop.f32.mrb[0].mxu0
    %v277 = vadd.f32 %v94, %v276
    %v278 = vpop.f32.mrb[0].mxu0
    %279 = vmatprep.mubr.f32.mxu0 0.0
    %280 = vmatmul.mubr.f32.gmra.mrb[0].mxu0 %v140
    %v281 = vpop.f32.mrb[0].mxu0
    %v282 = vadd.f32 %v94, %v281
    %v283 = vpop.f32.mrb[0].mxu0
    %284 = vmatprep.mubr.f32.mxu0 0.0
    %285 = vmatmul.mubr.f32.gmra.mrb[0].mxu0 %v143
    %v286 = vpop.f32.mrb[0].mxu0
    %v287 = vadd.f32 %v94, %v286
    %v288 = vpop.f32.mrb[0].mxu0
    %289 = vdwg.mxu0
    %v290 = vtanh.pop %v212
    %v291 = vtanh.pop %v217
    %v292 = vtanh.pop %v222
    %v293 = vtanh.pop %v227
    %v294 = vtanh.pop %v232
    %v295 = vtanh.pop %v237
    %v296 = vtanh.pop %v242
    %v297 = vtanh.pop %v247
    %v298 = vtanh.pop %v252
    %v299 = vtanh.pop %v257
    %v300 = vtanh.pop %v262
    %v301 = vtanh.pop %v267
    %v302 = vtanh.pop %v272
    %v303 = vtanh.pop %v277
    %v304 = vtanh.pop %v282
    %v305 = vtanh.pop %v287
    %v306 = vld [vmem:[%s4] sm:$0x1]
    %v308 = vlaneseq
    %v309 = vshrl.u32 %v308, 7
    %v310 = vsub.s32 0, %v309
    %v311 = vrot.slane %v306, %v310
    %v313 = vmul.f32 %v290, %v311
    %v314 = vmul.f32 %v291, %v311
    %v315 = vmul.f32 %v292, %v311
    %v316 = vmul.f32 %v293, %v311
    %v317 = vmul.f32 %v294, %v311
    %v318 = vmul.f32 %v295, %v311
    %v319 = vmul.f32 %v296, %v311
    %v320 = vmul.f32 %v297, %v311
    %v321 = vmul.f32 %v298, %v311
    %v322 = vmul.f32 %v299, %v311
    %v323 = vmul.f32 %v300, %v311
    %v324 = vmul.f32 %v301, %v311
    %v325 = vmul.f32 %v302, %v311
    %v326 = vmul.f32 %v303, %v311
    %v327 = vmul.f32 %v304, %v311
    %v328 = vmul.f32 %v305, %v311
    %v329 = vsel %vm96, %v313, 0.0
    %330 = vadd.xlane.f32.xlu0 %v329
    %v331 = vpop.xlane.xlu0 %330
    %v332 = vsel %vm96, %v314, 0.0
    %333 = vadd.xlane.f32.xlu0 %v332
    %v334 = vpop.xlane.xlu0 %333
    %v335 = vsel %vm96, %v315, 0.0
    %336 = vadd.xlane.f32.xlu0 %v335
    %v337 = vpop.xlane.xlu0 %336
    %v338 = vsel %vm96, %v316, 0.0
    %339 = vadd.xlane.f32.xlu0 %v338
    %v340 = vpop.xlane.xlu0 %339
    %v341 = vsel %vm96, %v317, 0.0
    %342 = vadd.xlane.f32.xlu0 %v341
    %v343 = vpop.xlane.xlu0 %342
    %v344 = vsel %vm96, %v318, 0.0
    %345 = vadd.xlane.f32.xlu0 %v344
    %v346 = vpop.xlane.xlu0 %345
    %v347 = vsel %vm96, %v319, 0.0
    %348 = vadd.xlane.f32.xlu0 %v347
    %v349 = vpop.xlane.xlu0 %348
    %v350 = vsel %vm96, %v320, 0.0
    %351 = vadd.xlane.f32.xlu0 %v350
    %v352 = vpop.xlane.xlu0 %351
    %v353 = vsel %vm96, %v321, 0.0
    %354 = vadd.xlane.f32.xlu0 %v353
    %v355 = vpop.xlane.xlu0 %354
    %v356 = vsel %vm96, %v322, 0.0
    %357 = vadd.xlane.f32.xlu0 %v356
    %v358 = vpop.xlane.xlu0 %357
    %v359 = vsel %vm96, %v323, 0.0
    %360 = vadd.xlane.f32.xlu0 %v359
    %v361 = vpop.xlane.xlu0 %360
    %v362 = vsel %vm96, %v324, 0.0
    %363 = vadd.xlane.f32.xlu0 %v362
    %v364 = vpop.xlane.xlu0 %363
    %v365 = vsel %vm96, %v325, 0.0
    %366 = vadd.xlane.f32.xlu0 %v365
    %v367 = vpop.xlane.xlu0 %366
    %v368 = vsel %vm96, %v326, 0.0
    %369 = vadd.xlane.f32.xlu0 %v368
    %v370 = vpop.xlane.xlu0 %369
    %v371 = vsel %vm96, %v327, 0.0
    %372 = vadd.xlane.f32.xlu0 %v371
    %v373 = vpop.xlane.xlu0 %372
    %v374 = vsel %vm96, %v328, 0.0
    %375 = vadd.xlane.f32.xlu0 %v374
    %v376 = vpop.xlane.xlu0 %375
    %v377 = vld [vmem:[#allocation8] sm:$0xff]
    %vm378 = vcmp.gt.s32.totalorder %v377, 0
    %v395 = vlaneseq
    %v396 = vand.u32 %v395, 127
    %v397 = vlaneseq
    %v398 = vshrl.u32 %v397, 7
    %v399 = vsub.s32 %v396, %v398
    %v400 = vrot.slane %v331, %v399
    %v401 = vadd.s32 %v396, 4294967288
    %v402 = vlaneseq
    %v403 = vshrl.u32 %v402, 7
    %v404 = vsub.s32 %v401, %v403
    %v405 = vrot.slane %v334, %v404
    %vm406 = vcmask 130112
    %v407 = vsel %vm406, %v405, %v400
    %v408 = vlaneseq
    %v409 = vshrl.u32 %v408, 7
    %v410 = vsub.s32 %v396, %v409
    %v411 = vrot.slane %v337, %v410
    %v412 = vlaneseq
    %v413 = vshrl.u32 %v412, 7
    %v414 = vsub.s32 %v401, %v413
    %v415 = vrot.slane %v340, %v414
    %v416 = vsel %vm406, %v415, %v411
    %v417 = vlaneseq
    %v418 = vshrl.u32 %v417, 7
    %v419 = vsub.s32 %v396, %v418
    %v420 = vrot.slane %v343, %v419
    %v421 = vlaneseq
    %v422 = vshrl.u32 %v421, 7
    %v423 = vsub.s32 %v401, %v422
    %v424 = vrot.slane %v346, %v423
    %v425 = vsel %vm406, %v424, %v420
    %v426 = vlaneseq
    %v427 = vshrl.u32 %v426, 7
    %v428 = vsub.s32 %v396, %v427
    %v429 = vrot.slane %v349, %v428
    %v430 = vlaneseq
    %v431 = vshrl.u32 %v430, 7
    %v432 = vsub.s32 %v401, %v431
    %v433 = vrot.slane %v352, %v432
    %v434 = vsel %vm406, %v433, %v429
    %v435 = vlaneseq
    %v436 = vshrl.u32 %v435, 7
    %v437 = vsub.s32 %v396, %v436
    %v438 = vrot.slane %v355, %v437
    %v439 = vlaneseq
    %v440 = vshrl.u32 %v439, 7
    %v441 = vsub.s32 %v401, %v440
    %v442 = vrot.slane %v358, %v441
    %v443 = vsel %vm406, %v442, %v438
    %v444 = vlaneseq
    %v445 = vshrl.u32 %v444, 7
    %v446 = vsub.s32 %v396, %v445
    %v447 = vrot.slane %v361, %v446
    %v448 = vlaneseq
    %v449 = vshrl.u32 %v448, 7
    %v450 = vsub.s32 %v401, %v449
    %v451 = vrot.slane %v364, %v450
    %v452 = vsel %vm406, %v451, %v447
    %v453 = vlaneseq
    %v454 = vshrl.u32 %v453, 7
    %v455 = vsub.s32 %v396, %v454
    %v456 = vrot.slane %v367, %v455
    %v457 = vlaneseq
    %v458 = vshrl.u32 %v457, 7
    %v459 = vsub.s32 %v401, %v458
    %v460 = vrot.slane %v370, %v459
    %v461 = vsel %vm406, %v460, %v456
    %v462 = vlaneseq
    %v463 = vshrl.u32 %v462, 7
    %v464 = vsub.s32 %v396, %v463
    %v465 = vrot.slane %v373, %v464
    %v466 = vlaneseq
    %v467 = vshrl.u32 %v466, 7
    %v468 = vsub.s32 %v401, %v467
    %v469 = vrot.slane %v376, %v468
    %v470 = vsel %vm406, %v469, %v465
    %vm471 = vcmask 1041409
    %v472 = vsel %vm471, %v416, %v407
    %vm473 = vcmask 1042434
    %v474 = vsel %vm473, %v425, %v472
    %vm475 = vcmask 1043459
    %v476 = vsel %vm475, %v434, %v474
    %vm477 = vcmask 1044484
    %v478 = vsel %vm477, %v443, %v476
    %vm479 = vcmask 1045509
    %v480 = vsel %vm479, %v452, %v478
    %vm481 = vcmask 1046534
    %v482 = vsel %vm481, %v461, %v480
    %vm483 = vcmask 1047559
    %v484 = vsel %vm483, %v470, %v482
    %v486 = vsel %vm378, %v484, -1e+30
    %v487 = vld [vmem:[#allocation2] sm:$0xff]
    %vm488 = vcmask 130048
    %v489 = vsel %vm488, %v486, -inf
    %490 = vmax.xlane.f32.xlu0 %v489
    %v491 = vpop.xlane.xlu0 %490
    %v492 = vmax.f32 %v487, %v491
    %v493 = vsub.f32 %v487, %v492
    %v494 = vmul.f32 %v493, 1.442695
    %v495 = vpow.pop %v494
    %497 = vset.pattern.permute.xlu0 0
    %498 = vperm.xlu0 %497, %v492
    %v499 = vpop.permute.xlu0 %498
    %v501 = vsub.f32 %v486, %v499
    %v502 = vmul.f32 %v501, 1.442695
    %v503 = vpow.pop %v502
    %v504 = vld [vmem:[#allocation3] sm:$0xff]
    %v505 = vmul.f32 %v495, %v504
    %v506 = vsel %vm488, %v503, 0.0
    %507 = vadd.xlane.f32.xlu0 %v506
    %v508 = vpop.xlane.xlu0 %507
    %v509 = vadd.f32 %v505, %v508
    %vm510 = vcmask 7168
    %511 = vst.msk [vmem:[#allocation3] sm:$0xff] %vm510, %v509
    %v512 = vld [vmem:[#allocation4] sm:$0xff]
    %514 = vset.pattern.permute.xlu0 0
    %515 = vperm.xlu0 %514, %v495
    %v516 = vpop.permute.xlu0 %515
    %v518 = vmul.f32 %v516, %v512
    %v519 = vlaneseq
    %v520 = vshrl.u32 %v519, 7
    %v521 = vsub.s32 0, %v520
    %v522 = vrot.slane %v503, %v521
    %524 = vbcast.lane.b32.xlu0 %v522, 256
    %v525 = vpop.permute.xlu0 %524
    %s527 = sor.u32 256, 8
    %528 = vbcast.lane.b32.xlu0 %v522, %s527
    %v529 = vpop.permute.xlu0 %528
    %v530 = vlaneseq
    %v531 = vshrl.u32 %v530, 7
    %v532 = vsub.s32 1, %v531
    %v533 = vrot.slane %v503, %v532
    %535 = vbcast.lane.b32.xlu0 %v533, 256
    %v536 = vpop.permute.xlu0 %535
    %s538 = sor.u32 256, 8
    %539 = vbcast.lane.b32.xlu0 %v533, %s538
    %v540 = vpop.permute.xlu0 %539
    %v541 = vlaneseq
    %v542 = vshrl.u32 %v541, 7
    %v543 = vsub.s32 2, %v542
    %v544 = vrot.slane %v503, %v543
    %546 = vbcast.lane.b32.xlu0 %v544, 256
    %v547 = vpop.permute.xlu0 %546
    %s549 = sor.u32 256, 8
    %550 = vbcast.lane.b32.xlu0 %v544, %s549
    %v551 = vpop.permute.xlu0 %550
    %v552 = vlaneseq
    %v553 = vshrl.u32 %v552, 7
    %v554 = vsub.s32 3, %v553
    %v555 = vrot.slane %v503, %v554
    %557 = vbcast.lane.b32.xlu0 %v555, 256
    %v558 = vpop.permute.xlu0 %557
    %s560 = sor.u32 256, 8
    %561 = vbcast.lane.b32.xlu0 %v555, %s560
    %v562 = vpop.permute.xlu0 %561
    %v563 = vlaneseq
    %v564 = vshrl.u32 %v563, 7
    %v565 = vsub.s32 4, %v564
    %v566 = vrot.slane %v503, %v565
    %568 = vbcast.lane.b32.xlu0 %v566, 256
    %v569 = vpop.permute.xlu0 %568
    %s571 = sor.u32 256, 8
    %572 = vbcast.lane.b32.xlu0 %v566, %s571
    %v573 = vpop.permute.xlu0 %572
    %v574 = vlaneseq
    %v575 = vshrl.u32 %v574, 7
    %v576 = vsub.s32 5, %v575
    %v577 = vrot.slane %v503, %v576
    %579 = vbcast.lane.b32.xlu0 %v577, 256
    %v580 = vpop.permute.xlu0 %579
    %s582 = sor.u32 256, 8
    %583 = vbcast.lane.b32.xlu0 %v577, %s582
    %v584 = vpop.permute.xlu0 %583
    %v585 = vlaneseq
    %v586 = vshrl.u32 %v585, 7
    %v587 = vsub.s32 6, %v586
    %v588 = vrot.slane %v503, %v587
    %590 = vbcast.lane.b32.xlu0 %v588, 256
    %v591 = vpop.permute.xlu0 %590
    %s593 = sor.u32 256, 8
    %594 = vbcast.lane.b32.xlu0 %v588, %s593
    %v595 = vpop.permute.xlu0 %594
    %v596 = vlaneseq
    %v597 = vshrl.u32 %v596, 7
    %v598 = vsub.s32 7, %v597
    %v599 = vrot.slane %v503, %v598
    %601 = vbcast.lane.b32.xlu0 %v599, 256
    %v602 = vpop.permute.xlu0 %601
    %s604 = sor.u32 256, 8
    %605 = vbcast.lane.b32.xlu0 %v599, %s604
    %v606 = vpop.permute.xlu0 %605
    %v607 = vmul.f32 %v525, %v69
    %v608 = vmul.f32 %v529, %v70
    %v609 = vmul.f32 %v536, %v71
    %v610 = vmul.f32 %v540, %v72
    %v611 = vmul.f32 %v547, %v73
    %v612 = vmul.f32 %v551, %v74
    %v613 = vmul.f32 %v558, %v75
    %v614 = vmul.f32 %v562, %v76
    %v615 = vmul.f32 %v569, %v77
    %v616 = vmul.f32 %v573, %v78
    %v617 = vmul.f32 %v580, %v79
    %v618 = vmul.f32 %v584, %v80
    %v619 = vmul.f32 %v591, %v81
    %v620 = vmul.f32 %v595, %v82
    %v621 = vmul.f32 %v602, %v83
    %v622 = vmul.f32 %v606, %v84
    %v623 = vsel %vm96, %v607, 0.0
    %v624 = vsel %vm96, %v608, 0.0
    %v625 = vadd.f32 %v623, %v624
    %v626 = vrot.slane %v625, 4
    %v627 = vadd.f32 %v625, %v626
    %v628 = vrot.slane %v627, 2
    %v629 = vadd.f32 %v627, %v628
    %v630 = vrot.slane %v629, 1
    %v631 = vadd.f32 %v629, %v630
    %v632 = vsel %vm96, %v609, 0.0
    %v633 = vsel %vm96, %v610, 0.0
    %v634 = vadd.f32 %v632, %v633
    %v635 = vrot.slane %v634, 4
    %v636 = vadd.f32 %v634, %v635
    %v637 = vrot.slane %v636, 2
    %v638 = vadd.f32 %v636, %v637
    %v639 = vrot.slane %v638, 1
    %v640 = vadd.f32 %v638, %v639
    %v641 = vsel %vm96, %v611, 0.0
    %v642 = vsel %vm96, %v612, 0.0
    %v643 = vadd.f32 %v641, %v642
    %v644 = vrot.slane %v643, 4
    %v645 = vadd.f32 %v643, %v644
    %v646 = vrot.slane %v645, 2
    %v647 = vadd.f32 %v645, %v646
    %v648 = vrot.slane %v647, 1
    %v649 = vadd.f32 %v647, %v648
    %v650 = vsel %vm96, %v613, 0.0
    %v651 = vsel %vm96, %v614, 0.0
    %v652 = vadd.f32 %v650, %v651
    %v653 = vrot.slane %v652, 4
    %v654 = vadd.f32 %v652, %v653
    %v655 = vrot.slane %v654, 2
    %v656 = vadd.f32 %v654, %v655
    %v657 = vrot.slane %v656, 1
    %v658 = vadd.f32 %v656, %v657
    %v659 = vsel %vm96, %v615, 0.0
    %v660 = vsel %vm96, %v616, 0.0
    %v661 = vadd.f32 %v659, %v660
    %v662 = vrot.slane %v661, 4
    %v663 = vadd.f32 %v661, %v662
    %v664 = vrot.slane %v663, 2
    %v665 = vadd.f32 %v663, %v664
    %v666 = vrot.slane %v665, 1
    %v667 = vadd.f32 %v665, %v666
    %v668 = vsel %vm96, %v617, 0.0
    %v669 = vsel %vm96, %v618, 0.0
    %v670 = vadd.f32 %v668, %v669
    %v671 = vrot.slane %v670, 4
    %v672 = vadd.f32 %v670, %v671
    %v673 = vrot.slane %v672, 2
    %v674 = vadd.f32 %v672, %v673
    %v675 = vrot.slane %v674, 1
    %v676 = vadd.f32 %v674, %v675
    %v677 = vsel %vm96, %v619, 0.0
    %v678 = vsel %vm96, %v620, 0.0
    %v679 = vadd.f32 %v677, %v678
    %v680 = vrot.slane %v679, 4
    %v681 = vadd.f32 %v679, %v680
    %v682 = vrot.slane %v681, 2
    %v683 = vadd.f32 %v681, %v682
    %v684 = vrot.slane %v683, 1
    %v685 = vadd.f32 %v683, %v684
    %v686 = vsel %vm96, %v621, 0.0
    %v687 = vsel %vm96, %v622, 0.0
    %v688 = vadd.f32 %v686, %v687
    %v689 = vrot.slane %v688, 4
    %v690 = vadd.f32 %v688, %v689
    %v691 = vrot.slane %v690, 2
    %v692 = vadd.f32 %v690, %v691
    %v693 = vrot.slane %v692, 1
    %v694 = vadd.f32 %v692, %v693
    %v703 = vsel %vm471, %v640, %v631
    %v704 = vsel %vm473, %v649, %v703
    %v705 = vsel %vm475, %v658, %v704
    %v706 = vsel %vm477, %v667, %v705
    %v707 = vsel %vm479, %v676, %v706
    %v708 = vsel %vm481, %v685, %v707
    %v709 = vsel %vm483, %v694, %v708
    %v711 = vadd.f32 %v518, %v709
    %712 = vst.msk [vmem:[#allocation4] sm:$0xff] %vm96, %v711
    %713 = vst.msk [vmem:[#allocation2] sm:$0xff] %vm510, %v492
    // Predicated region
    $region38: #{tpu_custom_call.1} parent=1 // pred_check
      %p714 = pneg %p60
    $region39: #{tpu_custom_call.1} parent=1 // pred_check_branch
      %716 = sbr.rel (%p714) target = $region41
    $region40: #{tpu_custom_call.1} parent=1 // pred_region
      %v717 = vld [vmem:[#allocation4] sm:$0xff]
      %v718 = vld [vmem:[#allocation3] sm:$0xff]
      %v719 = vrcp.pop %v718
      %721 = vset.pattern.permute.xlu0 0
      %722 = vperm.xlu0 %721, %v719
      %v723 = vpop.permute.xlu0 %722
      %v725 = vmul.f32 %v717, %v723
      %726 = vst.msk [vmem:[#allocation11] sm:$0xff] %vm96, %v725
    $region41: #{tpu_custom_call.1} parent=1 // pred_fallthru
      _
    // Predicated region
    $region42: #{tpu_custom_call.1} parent=1 // pred_check
      _
    $region43: #{tpu_custom_call.1} parent=1 // pred_check_branch
      %728 = sbr.rel (0) target = $region45
    $region44: #{tpu_custom_call.1} parent=1 // pred_region
      %s730 = ssub.s32 128, 128
      %731 = vsyncadd [#allocation7], %s730
      %s733 = sshll.u32 [#allocation11], 4
      %s734 = int_to_ptr.vmem [resolvable:$true] %s733
      %736 = dma.vmem_to_hbm [thread:$0]  %s734, 128, %s5, [#allocation7]
    $region45: #{tpu_custom_call.1} parent=1 // pred_fallthru
      _
    // Predicated region
    $region46: #{tpu_custom_call.1} parent=1 // pred_check
      _
    $region47: #{tpu_custom_call.1} parent=1 // pred_check_branch
      %738 = sbr.rel (0) target = $region49
    $region48: #{tpu_custom_call.1} parent=1 // pred_region
      %739 = dma.done [#allocation7], 128
    $region49: #{tpu_custom_call.1} parent=1 // pred_fallthru
      _
    %740 = vsyncpa [#allocation6], 1
    %741 = vsyncpa [#allocation9], 1
    %742 = vsyncpa [#allocation7], 1

</llo_original>
